<compile_context>
chip_gen: v5e
topology: v5e:2x2
jax: 0.10.0
libtpu: 0.0.40
codegen_flags: <defaults>
</compile_context>

<pallas_src>
import math

import jax
import jax.numpy as jnp
from jax.experimental import pallas as pl
from jax.experimental.pallas import tpu as pltpu

_TARGET_TILE_BYTES = 1 << 20        # ~1 MiB of data per tile, any dtype
_VMEM_LIMIT_BYTES = 48 << 20        # stays under v7x's 64 MiB physical VMEM


def _resolve_sizes(total, size_or_sizes):
    """Reproduce torch.split semantics for the chunk sizes."""
    if isinstance(size_or_sizes, int):
        n = size_or_sizes
        if n <= 0:
            raise ValueError(f"split size must be a positive int, got {n}")
        sizes = [n] * (total // n)
        if total % n:
            sizes.append(total % n)
        return sizes
    sizes = [int(s) for s in size_or_sizes]
    if sum(sizes) != total:
        raise ValueError("split sizes must sum to the extent of `dim`")
    return sizes


def _round_up(v, m):
    return -(-v // m) * m


def _copy_kernel(x_ref, o_ref):
    # Pure data movement: DMA in (auto-pipelined), vreg copy, DMA out.
    o_ref[...] = x_ref[...]


def _make_shift_kernel(phase):
    # Re-align an arbitrarily offset chunk: the output tile is the tail of
    # input block j and the head of input block j+1.  `phase` is static.
    def kernel(x0_ref, x1_ref, o_ref):
        o_ref[...] = jnp.concatenate(
            [x0_ref[:, phase:], x1_ref[:, :phase]], axis=-1)
    return kernel


def _plan_rows(outer, lane_len, bc, itemsize):
    """Sublane block: dtype-native multiple, ~1 MiB total tile, and >= 2 grid
    steps for sizeable chunks so v7x's two TensorCores both get work."""
    sub = max(8, 32 // itemsize)                 # 8 f32 / 16 bf16 / 32 int8
    target_elems = _TARGET_TILE_BYTES // itemsize
    row_budget = max(sub, target_elems // bc)
    if row_budget >= outer or outer <= sub:
        bo = outer
    else:
        bo = max(sub, (row_budget // sub) * sub)
    if (pl.cdiv(outer, bo) == 1 and pl.cdiv(lane_len, bc) == 1
            and outer * lane_len * itemsize >= _TARGET_TILE_BYTES // 2
            and outer >= 2 * sub):
        bo = max(sub, ((outer // 2) // sub) * sub)
    return bo


def _copy_chunk_aligned(x2, outer, lane_off, lane_len, bo, bc):
    """Chunk offset is a multiple of bc: single-read lane-dense copy."""
    base = lane_off // bc
    itemsize = jnp.dtype(x2.dtype).itemsize
    grid = (pl.cdiv(outer, bo), pl.cdiv(lane_len, bc))
    return pl.pallas_call(
        _copy_kernel,
        out_shape=jax.ShapeDtypeStruct((outer, lane_len), x2.dtype),
        grid_spec=pltpu.PrefetchScalarGridSpec(
            num_scalar_prefetch=0,
            grid=grid,
            in_specs=[pl.BlockSpec((bo, bc), lambda o, j, b=base: (o, b + j))],
            out_specs=pl.BlockSpec((bo, bc), lambda o, j: (o, j)),
        ),
        compiler_params=pltpu.CompilerParams(
            dimension_semantics=("parallel", "parallel"),
            vmem_limit_bytes=_VMEM_LIMIT_BYTES,
        ),
        cost_estimate=pl.CostEstimate(
            flops=0, transcendentals=0,
            bytes_accessed=2 * outer * lane_len * itemsize),
    )(x2)


def _copy_chunk_shifted(x2, outer, W, lane_off, lane_len, bo, bc):
    """Arbitrary chunk offset: read two adjacent input blocks per step and
    re-align in-kernel.  Second read of the chunk, but full-size tiles."""
    base = lane_off // bc
    phase = lane_off % bc                      # static, 0 < phase < bc
    last_in_blk = pl.cdiv(W, bc) - 1
    itemsize = jnp.dtype(x2.dtype).itemsize
    grid = (pl.cdiv(outer, bo), pl.cdiv(lane_len, bc))

    def in0_map(o, j, b=base):
        return (o, b + j)

    def in1_map(o, j, b=base, last=last_in_blk):
        # Clamp: when block j+1 runs off the array, the data it would have
        # supplied only lands in masked (out-of-range) output columns.
        return (o, jnp.minimum(b + j + 1, last))

    return pl.pallas_call(
        _make_shift_kernel(phase),
        out_shape=jax.ShapeDtypeStruct((outer, lane_len), x2.dtype),
        grid_spec=pltpu.PrefetchScalarGridSpec(
            num_scalar_prefetch=0,
            grid=grid,
            in_specs=[pl.BlockSpec((bo, bc), in0_map),
                      pl.BlockSpec((bo, bc), in1_map)],
            out_specs=pl.BlockSpec((bo, bc), lambda o, j: (o, j)),
        ),
        compiler_params=pltpu.CompilerParams(
            dimension_semantics=("parallel", "parallel"),
            vmem_limit_bytes=_VMEM_LIMIT_BYTES,
        ),
        cost_estimate=pl.CostEstimate(
            flops=0, transcendentals=0,
            bytes_accessed=3 * outer * lane_len * itemsize),
    )(x2, x2)


def _copy_chunk(x2, outer, W, lane_off, lane_len):
    """Copy columns [lane_off, lane_off + lane_len) of x2: (outer, W)."""
    itemsize = jnp.dtype(x2.dtype).itemsize
    sub = max(8, 32 // itemsize)
    target_elems = _TARGET_TILE_BYTES // itemsize
    # Lane block: lane-dense (multiple of 128), roughly target/sub wide, never
    # wider than the chunk rounded up to the next 128.
    bc_budget = max(128, ((target_elems // sub) // 128) * 128)
    bc_full = max(128, min(bc_budget, _round_up(lane_len, 128)))

    if lane_off % bc_full == 0:
        bo = _plan_rows(outer, lane_len, bc_full, itemsize)
        return _copy_chunk_aligned(x2, outer, lane_off, lane_len, bo, bc_full)

    if lane_off % 128 == 0:
        # Largest offset-compatible lane-dense block (a masked edge tile per
        # row-strip is cheap, so no "exact divisor" shrinking).
        bc_al = 128
        for cand in range(bc_full, 0, -128):
            if lane_off % cand == 0:
                bc_al = cand
                break
        if bc_al >= max(512, bc_full // 8):
            bo = _plan_rows(outer, lane_len, bc_al, itemsize)
            return _copy_chunk_aligned(x2, outer, lane_off, lane_len, bo, bc_al)

    # Offset not expressible with a healthy lane block -> shifted dual-read.
    bo = _plan_rows(outer, lane_len, bc_full, itemsize)
    return _copy_chunk_shifted(x2, outer, W, lane_off, lane_len, bo, bc_full)


def split_tensor(x: jax.Array, size_or_sizes, dim: int):
    """Pallas equivalent of SplitTensor.forward: returns a tuple of chunks."""
    ndim = x.ndim
    dim = dim % ndim
    split = x.shape[dim]
    sizes = _resolve_sizes(split, size_or_sizes)

    outer = math.prod(x.shape[:dim])
    inner = math.prod(x.shape[dim + 1:])
    W = split * inner

    # Free reshape (contiguous-dim merge; no transpose, no data movement).
    x2 = x.reshape(outer, W)

    outs = []
    off = 0
    for s in sizes:
        chunk_shape = x.shape[:dim] + (s,) + x.shape[dim + 1:]
        if s == split:
            outs.append(x)                      # whole-tensor chunk
        elif s == 0 or outer == 0 or inner == 0:
            outs.append(jnp.zeros(chunk_shape, x.dtype))
        else:
            o = _copy_chunk(x2, outer, W, off * inner, s * inner)
            outs.append(o.reshape(chunk_shape))
        off += s
    return tuple(outs)


def _check_split(x, size_or_sizes, dim):
    outs = jax.block_until_ready(split_tensor(x, size_or_sizes, dim))
    d = dim % x.ndim
    sizes = _resolve_sizes(x.shape[d], size_or_sizes)
    ok = len(outs) == len(sizes)
    off = 0
    for s, o in zip(sizes, outs):
        ref = jax.lax.slice_in_dim(x, off, off + s, axis=d)
        ok &= (o.shape == ref.shape) and (o.dtype == ref.dtype)
        ok &= bool(jnp.array_equal(ref, o))
        off += s
    return ok


if __name__ == "__main__":
    key = jax.random.PRNGKey(0)
    # NCHW input, matching the PyTorch conv-style layout the module sees.
    x = jax.random.normal(key, (2, 4, 16, 16), dtype=jnp.float32)

    ok = True
    ok &= _check_split(x, 2, 1)         # SplitTensor(2, dim=1): aligned path
    ok &= _check_split(x, [1, 3], 1)    # uneven channel split: shifted path
    ok &= _check_split(x, [5, 11], 3)   # unaligned last-axis split: shifted path

    # bf16 input exercises the dtype-aware tile budget / sublane multiple.
    xb = jax.random.normal(jax.random.PRNGKey(1), (4, 6, 32, 32),
                           dtype=jnp.bfloat16)
    ok &= _check_split(xb, 4, 1)        # sizes [4, 2] along channels

    if ok:
        print("KERNEL_OK")
    else:
        raise SystemExit("mismatch vs reference")
</pallas_src>

<mosaic_0001>
module attributes {stable_mosaic.version = 11 : i64} {
  func.func @_copy_kernel(%arg0: i32, %arg1: i32, %arg2: memref<2x512xf32, #tpu.memory_space<vmem>>, %arg3: memref<2x512xf32, #tpu.memory_space<vmem>>) attributes {dimension_semantics = [#tpu.dimension_semantics<parallel>, #tpu.dimension_semantics<parallel>], iteration_bounds = array<i64: 1, 1>, scalar_prefetch = 0 : i64, scratch_operands = 0 : i64, tpu.core_type = #tpu.core_type<tc>, window_params = [{transform_indices = @transform_0, window_bounds = array<i64: 2, 512>}, {transform_indices = @transform_1, window_bounds = array<i64: 2, 512>}]} {
    %c0 = arith.constant 0 : index
    %c0_0 = arith.constant 0 : index
    %0 = vector.load %arg2[%c0, %c0_0] : memref<2x512xf32, #tpu.memory_space<vmem>>, vector<2x512xf32>
    %c0_1 = arith.constant 0 : index
    %c0_2 = arith.constant 0 : index
    %1 = vector.load %arg3[%c0_1, %c0_2] : memref<2x512xf32, #tpu.memory_space<vmem>>, vector<2x512xf32>
    tpu.vector_store %arg3[%c0_1, %c0_2], %0 {strides = array<i32>} : memref<2x512xf32, #tpu.memory_space<vmem>>, vector<2x512xf32>,
    return
  }
  func.func @transform_0(%arg0: i32, %arg1: i32) -> (i32, i32) {
    %c0_i32 = arith.constant 0 : i32
    %0 = arith.addi %c0_i32, %arg1 : i32
    %c0_i32_0 = arith.constant 0 : i32
    return %arg0, %0 : i32, i32
  }
  func.func @transform_1(%arg0: i32, %arg1: i32) -> (i32, i32) {
    %c0_i32 = arith.constant 0 : i32
    return %arg0, %arg1 : i32, i32
  }
}

</mosaic_0001>

<llo_original>
// kernel: tpu_custom_call.1
$region0: #{tpu_custom_call.1}
  #allocation0 [shape = 'u32[]', space=smem, size = 0x4, offset = 0x4, fixed_abs, tag = 'smem constant byte address 0x4 - core index']
  #allocation1 [shape = 'u32[72,128]{1,0:T(1,128)}', space=vmem, size = 0x9000, scoped, tag = 'internal scratch']
  %s0 = inlined_call_operand.hbm [shape: f32[2,1024], index: 0, kind: input, shape index: {}]
  %s1 = inlined_call_operand.hbm [shape: f32[2,512], index: 1, kind: output, shape index: {}]
  %s2 = sld [smem:[#allocation0]]
  $region18: #{tpu_custom_call.1} parent=0
    _
  %s4 = ssub.s32 1, %s2
  %s5 = scalar_select 0, %s4, %s2
  $region1: #{tpu_custom_call.1} parent=0
    #allocation2 [shape = 'u8[4096]{0}', space=vmem, size = 0x1000, scoped, tag = 'input window, operand 0, single buffered']
    #allocation3 [shape = 's32[1]{0}', space=sflag, size = 0x4, scoped, tag = 'scoped memory for tpu_custom_call.1']
    #allocation4 [shape = 's32[1]{0}', space=sflag, size = 0x4, scoped, tag = 'scoped memory for tpu_custom_call.1']
    #allocation5 [shape = 'u8[4096]{0}', space=vmem, size = 0x1000, scoped, tag = 'output window, operand 0, single buffered']
    %6 = vsyncpa [#allocation3], 0
    %7 = vsyncpa [#allocation4], 0
    // Predicated region
    $region2: #{tpu_custom_call.1} parent=1 // pred_check
      _
    $region3: #{tpu_custom_call.1} parent=1 // pred_check_branch
      %9 = sbr.rel (0) target = $region5
    $region4: #{tpu_custom_call.1} parent=1 // pred_region
      %11 = vsyncadd [#allocation3], 0
      %s13 = sshll.u32 %s0, 4
      %s14 = int_to_ptr.hbm [resolvable:$true] %s13
      %s15 = sshll.u32 [#allocation2], 4
      %s16 = int_to_ptr.vmem [resolvable:$true] %s15
      %18 = dma.hbm_to_vmem [thread:$0]  %s14, 128, %s16, [#allocation3]
    $region5: #{tpu_custom_call.1} parent=1 // pred_fallthru
      _
    // Predicated region
    $region6: #{tpu_custom_call.1} parent=1 // pred_check
      _
    $region7: #{tpu_custom_call.1} parent=1 // pred_check_branch
      %20 = sbr.rel (0) target = $region9
    $region8: #{tpu_custom_call.1} parent=1 // pred_region
      %22 = dma.done [#allocation3], 128
    $region9: #{tpu_custom_call.1} parent=1 // pred_fallthru
      _
    %v23 = vld [vmem:[#allocation2] sm:$0xff]
    %24 = vst [vmem:[#allocation5] sm:$0xff] %v23
    // Predicated region
    $region10: #{tpu_custom_call.1} parent=1 // pred_check
      _
    $region11: #{tpu_custom_call.1} parent=1 // pred_check_branch
      %26 = sbr.rel (0) target = $region13
    $region12: #{tpu_custom_call.1} parent=1 // pred_region
      %28 = vsyncadd [#allocation4], 0
      %s30 = sshll.u32 [#allocation5], 4
      %s31 = int_to_ptr.vmem [resolvable:$true] %s30
      %s32 = sshll.u32 %s1, 4
      %s33 = int_to_ptr.hbm [resolvable:$true] %s32
      %35 = dma.vmem_to_hbm [thread:$0]  %s31, 128, %s33, [#allocation4]
    $region13: #{tpu_custom_call.1} parent=1 // pred_fallthru
      _
    // Predicated region
    $region14: #{tpu_custom_call.1} parent=1 // pred_check
      _
    $region15: #{tpu_custom_call.1} parent=1 // pred_check_branch
      %37 = sbr.rel (0) target = $region17
    $region16: #{tpu_custom_call.1} parent=1 // pred_region
      %39 = dma.done [#allocation4], 128
    $region17: #{tpu_custom_call.1} parent=1 // pred_fallthru
      _
    %40 = vsyncpa [#allocation3], 1
    %41 = vsyncpa [#allocation4], 1

</llo_original>
